<compile_context>
chip_gen: v7x
topology: tpu7x:2x2x1
jax: 0.10.0
libtpu: 0.0.40
codegen_flags: <defaults>
</compile_context>

<pallas_src>
import jax
import jax.numpy as jnp
from jax.experimental import pallas as pl
from jax.experimental.pallas import tpu as pltpu

SQRT_2_OVER_PI = 0.7978845608028654  # sqrt(2 / pi)
GELU_COEFF = 0.044715


def gelu_kernel(x_ref, o_ref):
    # Loads/stores stay in the I/O dtype (bf16 stays bf16 in HBM traffic);
    # widen to f32 only for the in-register math.
    x = x_ref[...].astype(jnp.float32)
    inner = SQRT_2_OVER_PI * (x + GELU_COEFF * x * x * x)
    out = 0.5 * x * (1.0 + jnp.tanh(inner))  # tanh -> EUP (separate bundle slot)
    o_ref[...] = out.astype(o_ref.dtype)


def _round_up(v, m):
    return ((v + m - 1) // m) * m


def _sublane_multiple(itemsize):
    # Native packed-sublane tile height: f32 -> 8, bf16 -> 16, int8/fp8 -> 32.
    return {4: 8, 2: 16, 1: 32}.get(itemsize, 8)


def _pick_cols(n):
    """Largest lane-dense width (multiple of 128) dividing n exactly; else pad path."""
    for c in (512, 256, 128):
        if n % c == 0:
            return c, False
    return 512, True


def _num_tensorcores():
    """Best-effort TensorCores-per-chip (2 on v7x, 1 on v5e/v6e). Defaults to 1."""
    try:
        info = pltpu.get_tpu_info()
    except Exception:
        return 1
    for attr in ("num_cores", "core_count", "num_tensorcores",
                 "tensor_core_count", "cores_per_chip", "num_tensor_cores"):
        v = getattr(info, attr, None)
        if isinstance(v, int) and v >= 1:
            return v
    return 1


def gelu(x, *, tile_bytes=2 * 1024 * 1024):
    """Tanh-approximation GELU. Returns same shape/dtype as x."""
    orig_shape = x.shape
    dtype = x.dtype
    n = x.size
    itemsize = jnp.dtype(dtype).itemsize
    sub = _sublane_multiple(itemsize)

    # Lane-dense layout without a pad/slice round-trip whenever n is 128-aligned.
    cols, needs_pad = _pick_cols(n)
    flat = x.reshape(-1)
    padded_n = _round_up(n, cols) if needs_pad else n
    if needs_pad:
        flat = jnp.pad(flat, (0, padded_n - n))  # GELU(0) == 0: padding is inert
    rows = padded_n // cols
    x2d = flat.reshape(rows, cols)

    # ~2 MiB row tiles saturate HBM bandwidth; bigger buys nothing and wastes VMEM.
    tm_cap = max(sub, (tile_bytes // (cols * itemsize)) // sub * sub)

    n_cores = _num_tensorcores()

    if rows <= tm_cap and n_cores < 2:
        tm = rows  # single full-extent block: no per-grid-step overhead on 1-TC chips
    elif rows <= tm_cap:
        # Multi-TC chip: split into 2 even steps when there is enough work.
        tm = max(sub, _round_up(pl.cdiv(rows, 2), sub)) if rows >= 2 * sub else rows
    else:
        tm = tm_cap
        if n_cores >= 2:
            steps = pl.cdiv(rows, tm)
            if steps % 2:  # keep the step count even so both TCs get equal work
                tm = max(sub, _round_up(pl.cdiv(rows, steps + 1), sub))

    grid = (pl.cdiv(rows, tm),)

    # Prefer explicit cross-core sharding when we know there are 2 TensorCores;
    # always keep the portable "parallel" fallback so the kernel runs everywhere.
    sem_candidates = [("parallel",)]
    if n_cores >= 2 and hasattr(pltpu, "CORE_PARALLEL"):
        sem_candidates.insert(0, (pltpu.CORE_PARALLEL,))

    def _make_call(dim_sem):
        return pl.pallas_call(
            gelu_kernel,
            out_shape=jax.ShapeDtypeStruct((rows, cols), dtype),
            grid_spec=pltpu.PrefetchScalarGridSpec(
                num_scalar_prefetch=0,
                grid=grid,
                in_specs=[pl.BlockSpec((tm, cols), lambda i: (i, 0))],
                out_specs=pl.BlockSpec((tm, cols), lambda i: (i, 0)),
            ),
            compiler_params=pltpu.CompilerParams(
                dimension_semantics=dim_sem,
                vmem_limit_bytes=32 * 1024 * 1024,
            ),
            cost_estimate=pl.CostEstimate(
                flops=10 * padded_n,
                transcendentals=padded_n,
                bytes_accessed=2 * padded_n * itemsize,
            ),
        )

    out2d = None
    last_err = None
    for sem in sem_candidates:
        try:
            out2d = _make_call(sem)(x2d)
            break
        except Exception as e:  # e.g. CORE_PARALLEL unsupported: fall back
            last_err = e
            out2d = None
    if out2d is None:
        raise last_err

    if needs_pad:
        return out2d.reshape(-1)[:n].reshape(orig_shape)
    return out2d.reshape(orig_shape)


if __name__ == "__main__":
    def ref_gelu(x):
        return 0.5 * x * (1.0 + jnp.tanh(SQRT_2_OVER_PI * (x + GELU_COEFF * (x ** 3))))

    # Primary shape implied by the module's use in a transformer FFN.
    key = jax.random.PRNGKey(0)
    batch, seq, hidden = 2, 8, 32
    x = jax.random.normal(key, (batch, seq, hidden), dtype=jnp.float32)
    y = jax.block_until_ready(gelu(x))
    assert y.shape == x.shape and y.dtype == x.dtype
    assert jnp.allclose(y, ref_gelu(x), atol=1e-5, rtol=1e-5), "mismatch (aligned path)"

    # Ragged grid path: tiny tiles force a partial last row-block (on-device masking check).
    x2 = jax.random.normal(jax.random.PRNGKey(1), (2, 9, 64), dtype=jnp.float32)  # n=1152 -> (9, 128)
    y2 = jax.block_until_ready(gelu(x2, tile_bytes=8 * 128 * 4))
    assert jnp.allclose(y2, ref_gelu(x2), atol=1e-5, rtol=1e-5), "mismatch (ragged path)"

    # Non-128-aligned path (pad + slice fallback).
    x3 = jax.random.normal(jax.random.PRNGKey(2), (2, 8, 33), dtype=jnp.float32)
    y3 = jax.block_until_ready(gelu(x3))
    assert jnp.allclose(y3, ref_gelu(x3), atol=1e-5, rtol=1e-5), "mismatch (padded path)"

    print("KERNEL_OK")
</pallas_src>

<mosaic_0001>
module attributes {stable_mosaic.version = 11 : i64} {
  func.func @gelu_kernel(%arg0: i32, %arg1: memref<1x512xf32, #tpu.memory_space<vmem>>, %arg2: memref<1x512xf32, #tpu.memory_space<vmem>>) attributes {dimension_semantics = [#tpu.dimension_semantics<parallel>], iteration_bounds = array<i64: 1>, scalar_prefetch = 0 : i64, scratch_operands = 0 : i64, tpu.core_type = #tpu.core_type<tc>, window_params = [{transform_indices = @transform_0, window_bounds = array<i64: 1, 512>}, {transform_indices = @transform_1, window_bounds = array<i64: 1, 512>}]} {
    %c0 = arith.constant 0 : index
    %c0_0 = arith.constant 0 : index
    %0 = vector.load %arg1[%c0, %c0_0] : memref<1x512xf32, #tpu.memory_space<vmem>>, vector<1x512xf32>
    %cst = arith.constant 4.471500e-02 : f32
    %1 = vector.broadcast %cst : f32 to vector<1x512xf32>
    %2 = arith.mulf %1, %0 : vector<1x512xf32>
    %3 = arith.mulf %2, %0 : vector<1x512xf32>
    %4 = arith.mulf %3, %0 : vector<1x512xf32>
    %5 = arith.addf %0, %4 : vector<1x512xf32>
    %cst_1 = arith.constant 0.797884583 : f32
    %6 = vector.broadcast %cst_1 : f32 to vector<1x512xf32>
    %7 = arith.mulf %6, %5 : vector<1x512xf32>
    %cst_2 = arith.constant 5.000000e-01 : f32
    %8 = vector.broadcast %cst_2 : f32 to vector<1x512xf32>
    %9 = arith.mulf %8, %0 : vector<1x512xf32>
    %10 = math.tanh %7 : vector<1x512xf32>
    %cst_3 = arith.constant 1.000000e+00 : f32
    %11 = vector.broadcast %cst_3 : f32 to vector<1x512xf32>
    %12 = arith.addf %11, %10 : vector<1x512xf32>
    %13 = arith.mulf %9, %12 : vector<1x512xf32>
    %c0_4 = arith.constant 0 : index
    %c0_5 = arith.constant 0 : index
    %14 = vector.load %arg2[%c0_4, %c0_5] : memref<1x512xf32, #tpu.memory_space<vmem>>, vector<1x512xf32>
    tpu.vector_store %arg2[%c0_4, %c0_5], %13 {strides = array<i32>} : memref<1x512xf32, #tpu.memory_space<vmem>>, vector<1x512xf32>,
    return
  }
  func.func @transform_0(%arg0: i32) -> (i32, i32) {
    %c0_i32 = arith.constant 0 : i32
    %c0_i32_0 = arith.constant 0 : i32
    return %arg0, %c0_i32 : i32, i32
  }
  func.func @transform_1(%arg0: i32) -> (i32, i32) {
    %c0_i32 = arith.constant 0 : i32
    %c0_i32_0 = arith.constant 0 : i32
    return %arg0, %c0_i32 : i32, i32
  }
}

</mosaic_0001>

<llo_original>
// kernel: tpu_custom_call.1
$region0: #{tpu_custom_call.1}
  #allocation0 [shape = 'u32[]', space=smem, size = 0x4, offset = 0x4, fixed_abs, tag = 'smem constant byte address 0x4 - core index']
  #allocation1 [shape = 'u32[144,128]{1,0:T(1,128)}', space=vmem, size = 0x12000, scoped, tag = 'internal scratch']
  %s0 = inlined_call_operand.hbm [shape: f32[1,512], index: 0, kind: input, shape index: {}]
  %s1 = inlined_call_operand.hbm [shape: f32[1,512], index: 1, kind: output, shape index: {}]
  %s2 = sld [smem:[#allocation0]]
  $region18: #{tpu_custom_call.1} parent=0
    _
  %s4 = ssub.s32 1, %s2
  %s5 = scalar_select 0, %s4, %s2
  $region1: #{tpu_custom_call.1} parent=0
    #allocation2 [shape = 'u8[2048]{0}', space=vmem, size = 0x800, scoped, tag = 'input window, operand 0, single buffered']
    #allocation3 [shape = 's32[1]{0}', space=sflag, size = 0x4, scoped, tag = 'scoped memory for tpu_custom_call.1']
    #allocation4 [shape = 's32[1]{0}', space=sflag, size = 0x4, scoped, tag = 'scoped memory for tpu_custom_call.1']
    #allocation5 [shape = 'u8[2048]{0}', space=vmem, size = 0x800, scoped, tag = 'output window, operand 0, single buffered']
    %6 = vsyncpa [#allocation3], 0
    %7 = vsyncpa [#allocation4], 0
    // Predicated region
    $region2: #{tpu_custom_call.1} parent=1 // pred_check
      _
    $region3: #{tpu_custom_call.1} parent=1 // pred_check_branch
      %9 = sbr.rel (0) target = $region5
    $region4: #{tpu_custom_call.1} parent=1 // pred_region
      %s11 = ssub.s32 64, 64
      %12 = vsyncadd [#allocation3], %s11
      %s14 = sshll.u32 [#allocation2], 4
      %s15 = int_to_ptr.vmem [resolvable:$true] %s14
      %17 = dma.hbm_to_vmem [thread:$0]  %s0, 64, %s15, [#allocation3]
    $region5: #{tpu_custom_call.1} parent=1 // pred_fallthru
      _
    // Predicated region
    $region6: #{tpu_custom_call.1} parent=1 // pred_check
      _
    $region7: #{tpu_custom_call.1} parent=1 // pred_check_branch
      %19 = sbr.rel (0) target = $region9
    $region8: #{tpu_custom_call.1} parent=1 // pred_region
      %20 = dma.done [#allocation3], 64
    $region9: #{tpu_custom_call.1} parent=1 // pred_fallthru
      _
    %v21 = vld [vmem:[#allocation2] sm:$0xf]
    %v22 = vmul.f32 %v21, 0.044715
    %v23 = vmul.f32 %v22, %v21
    %v24 = vmul.f32 %v23, %v21
    %v25 = vadd.f32 %v21, %v24
    %v26 = vmul.f32 %v25, 0.7978846
    %v27 = vmul.f32 %v21, 0.5
    %v28 = vtanh.pop %v26
    %v29 = vadd.f32 %v28, 1.0
    %v30 = vmul.f32 %v27, %v29
    %v31 = vlaneseq
    %vm32 = vcmp.ge.s32.totalorder %v31, 0
    %vm33 = vcmp.lt.s32.totalorder %v31, 512
    %vm34 = vmand %vm32, %vm33
    %35 = vst.msk [vmem:[#allocation5] sm:$0xf] %vm34, %v30
    // Predicated region
    $region10: #{tpu_custom_call.1} parent=1 // pred_check
      _
    $region11: #{tpu_custom_call.1} parent=1 // pred_check_branch
      %37 = sbr.rel (0) target = $region13
    $region12: #{tpu_custom_call.1} parent=1 // pred_region
      %s39 = ssub.s32 64, 64
      %40 = vsyncadd [#allocation4], %s39
      %s42 = sshll.u32 [#allocation5], 4
      %s43 = int_to_ptr.vmem [resolvable:$true] %s42
      %45 = dma.vmem_to_hbm [thread:$0]  %s43, 64, %s1, [#allocation4]
    $region13: #{tpu_custom_call.1} parent=1 // pred_fallthru
      _
    // Predicated region
    $region14: #{tpu_custom_call.1} parent=1 // pred_check
      _
    $region15: #{tpu_custom_call.1} parent=1 // pred_check_branch
      %47 = sbr.rel (0) target = $region17
    $region16: #{tpu_custom_call.1} parent=1 // pred_region
      %48 = dma.done [#allocation4], 64
    $region17: #{tpu_custom_call.1} parent=1 // pred_fallthru
      _
    %49 = vsyncpa [#allocation3], 1
    %50 = vsyncpa [#allocation4], 1

</llo_original>
